<compile_context>
chip_gen: v5e
topology: v5e:2x2
jax: 0.10.0
libtpu: 0.0.40
codegen_flags: <defaults>
</compile_context>

<pallas_src>
import jax
import jax.numpy as jnp
from jax.experimental import pallas as pl
from jax.experimental.pallas import tpu as pltpu


def _round_up(x, m):
    return ((x + m - 1) // m) * m


def _cdiv(a, b):
    return -(-a // b)


def _tpu_generation():
    try:
        kind = jax.devices()[0].device_kind.lower()
    except Exception:
        return "unknown"
    if "v5 lite" in kind or "v5e" in kind or "v5lite" in kind:
        return "v5e"
    if "v6" in kind:
        return "v6e"
    if "v7" in kind:
        return "v7x"
    return "unknown"


def _vmem_physical_bytes(gen):
    try:
        cap = int(pltpu.get_tpu_info().vmem_capacity_bytes)
        if cap > 0:
            return cap
    except Exception:
        pass
    # v7x: 64 MiB per TensorCore; v5e/v6e: 128 MiB.  Unknown -> conservative.
    return (64 << 20) if gen in ("v7x", "unknown") else (128 << 20)


def _sublane_min(dtype):
    # Minimum second-to-last tile dim: 8 for f32, 16 for bf16, 32 for int8.
    return max(8, 32 // max(1, jnp.dtype(dtype).itemsize))


# ---------------------------------------------------------------------------
# Kernels
# ---------------------------------------------------------------------------
def _linear_bias_kernel_f32(x_ref, w_ref, b_ref, o_ref):
    # x_ref: (tm, tk) activations
    # w_ref: (tk, tn) weight pre-transposed to [K, N] (lane-dense N)
    # b_ref: (1, tn)  bias
    # o_ref: (tm, tn) float32 output, resident across the K axis.
    @pl.when(pl.program_id(2) == 0)
    def _():
        # Bias hoisted into the accumulator init.
        o_ref[...] = jnp.broadcast_to(b_ref[...].astype(jnp.float32),
                                      o_ref.shape)

    o_ref[...] += jnp.dot(x_ref[...], w_ref[...],
                          preferred_element_type=jnp.float32)


def _linear_bias_kernel_acc(x_ref, w_ref, b_ref, o_ref, acc_ref):
    # Same as above but with an f32 VMEM accumulator for narrow output dtypes.
    k = pl.program_id(2)

    @pl.when(k == 0)
    def _():
        acc_ref[...] = jnp.broadcast_to(b_ref[...].astype(jnp.float32),
                                        acc_ref.shape)

    acc_ref[...] += jnp.dot(x_ref[...], w_ref[...],
                            preferred_element_type=jnp.float32)

    @pl.when(k == pl.num_programs(2) - 1)
    def _():
        o_ref[...] = acc_ref[...].astype(o_ref.dtype)


# ---------------------------------------------------------------------------
# One-time parameter preparation (pad + transpose the weight once)
# ---------------------------------------------------------------------------
def prepare_mlp_params(weight, bias, *, compute_dtype=None, gen=None):
    """Layout fixup done once per parameter set (not per forward call).

    weight: [nclass, nhid] (PyTorch nn.Linear layout); bias: [nclass].
    Returns a dict with the weight transposed to a zero-padded, lane-dense
    [nhid_p, nclass_p] slab and the bias as a padded (1, nclass_p) row.
    """
    if gen is None:
        gen = _tpu_generation()
    nclass, nhid = weight.shape
    assert bias.shape == (nclass,)

    nhid_p = _round_up(nhid, 128)                       # lane-dense K
    lane_mult = 256 if (gen in ("v6e", "v7x", "unknown") and nclass > 128) \
        else 128
    nclass_p = _round_up(nclass, lane_mult)             # lane-dense N

    w_kn = weight.T                                     # [nhid, nclass]
    if compute_dtype is not None:
        w_kn = w_kn.astype(compute_dtype)
    w_kn = jnp.pad(w_kn, ((0, nhid_p - nhid), (0, nclass_p - nclass)))
    b2 = jnp.pad(bias, (0, nclass_p - nclass)).reshape(1, nclass_p)

    return {
        "w_kn": w_kn, "b": b2,
        "nhid": nhid, "nclass": nclass,
        "nhid_p": nhid_p, "nclass_p": nclass_p,
        "gen": gen, "compute_dtype": compute_dtype,
    }


# ---------------------------------------------------------------------------
# Forward
# ---------------------------------------------------------------------------
def mlp_forward(x, params, *, slice_output=True):
    """y = x @ weight.T + bias (torch.nn.Linear forward) on prepared params."""
    gen = params["gen"]
    nhid, nclass = params["nhid"], params["nclass"]
    nhid_p, nclass_p = params["nhid_p"], params["nclass_p"]
    w_kn, b2 = params["w_kn"], params["b"]

    batch, nhid_x = x.shape
    assert nhid_x == nhid
    out_dtype = x.dtype
    if params["compute_dtype"] is not None:
        x = x.astype(params["compute_dtype"])

    # ---- tile sizes -------------------------------------------------------
    # K: largest 128-multiple (<= 2048) dividing the padded hidden dim.
    tk = 128
    for cand in (2048, 1024, 512, 256, 128):
        if nhid_p % cand == 0:
            tk = cand
            break
    tk = min(tk, nhid_p)

    # N: tn = 256 on v6e/v7x when it divides the padded lane dim, else 128.
    if gen in ("v6e", "v7x", "unknown") and nclass_p % 256 == 0:
        tn = 256
    else:
        tn = 128
    tn = min(tn, nclass_p)
    grid_j = nclass_p // tn

    # M: no split on v5e/v6e (single TensorCore -> grid is a serial loop);
    # split across v7x's two TensorCores only if the N grid has one tile.
    sub = _sublane_min(x.dtype)
    tm_cap = 512 if gen in ("v5e", "v6e") else 256
    min_m_tiles = 2 if (gen == "v7x" and grid_j < 2 and batch > sub) else 1
    n_m_tiles = max(min_m_tiles, _cdiv(batch, tm_cap))
    tm = _round_up(_cdiv(batch, n_m_tiles), sub)
    batch_p = tm * n_m_tiles                    # tm always divides batch_p

    grid = (batch_p // tm, nclass_p // tn, nhid_p // tk)

    # ---- pad activations only (weight/bias already prepared) --------------
    x_p = x
    if batch_p != batch or nhid_p != nhid:
        x_p = jnp.pad(x, ((0, batch_p - batch), (0, nhid_p - nhid)))

    # ---- explicit VMEM budget ---------------------------------------------
    xb = jnp.dtype(x_p.dtype).itemsize
    wb = jnp.dtype(w_kn.dtype).itemsize
    ob = jnp.dtype(out_dtype).itemsize
    use_acc_scratch = out_dtype != jnp.float32
    est = (2 * tm * tk * xb                  # x tile, double-buffered
           + 2 * tk * tn * wb                # weight tile, double-buffered
           + 2 * 8 * tn * 4                  # bias tile (sublane padded)
           + 2 * tm * tn * ob                # output tile, double-buffered
           + (tm * tn * 4 if use_acc_scratch else 0))
    vmem_cap = int(0.75 * _vmem_physical_bytes(gen))
    vmem_limit = int(min(vmem_cap, max(4 << 20, 2 * est)))

    if use_acc_scratch:
        kernel = _linear_bias_kernel_acc
        scratch_shapes = [pltpu.VMEM((tm, tn), jnp.float32)]
    else:
        kernel = _linear_bias_kernel_f32
        scratch_shapes = []

    out = pl.pallas_call(
        kernel,
        out_shape=jax.ShapeDtypeStruct((batch_p, nclass_p), out_dtype),
        grid_spec=pltpu.PrefetchScalarGridSpec(
            num_scalar_prefetch=0,
            grid=grid,
            in_specs=[
                pl.BlockSpec((tm, tk), lambda i, j, k: (i, k)),   # x
                pl.BlockSpec((tk, tn), lambda i, j, k: (k, j)),   # weight [K,N]
                pl.BlockSpec((1, tn), lambda i, j, k: (0, j)),    # bias
            ],
            out_specs=pl.BlockSpec((tm, tn), lambda i, j, k: (i, j)),
            scratch_shapes=scratch_shapes,
        ),
        compiler_params=pltpu.CompilerParams(
            dimension_semantics=("parallel", "parallel", "arbitrary"),
            vmem_limit_bytes=vmem_limit,
        ),
    )(x_p, w_kn, b2)

    if slice_output and (batch_p != batch or nclass_p != nclass):
        out = out[:batch, :nclass]
    return out


if __name__ == "__main__":
    nhid, nclass = 32, 10
    batch = 8

    key = jax.random.PRNGKey(0)
    kx, kw, kb = jax.random.split(key, 3)

    x = jax.random.normal(kx, (batch, nhid), dtype=jnp.float32)
    # MLP.reset_parameters: weight ~ Normal(0, 0.05); bias keeps PyTorch's
    # default U(-1/sqrt(nhid), 1/sqrt(nhid)) init.
    weight = 0.05 * jax.random.normal(kw, (nclass, nhid), dtype=jnp.float32)
    bound = 1.0 / (nhid ** 0.5)
    bias = jax.random.uniform(kb, (nclass,), dtype=jnp.float32,
                              minval=-bound, maxval=bound)

    params = prepare_mlp_params(weight, bias)   # one-time layout fixup
    y = mlp_forward(x, params)
    y = jax.block_until_ready(y)

    # Reference check against plain JAX.
    y_ref = x @ weight.T + bias
    assert y.shape == (batch, nclass)
    assert jnp.allclose(y, y_ref, atol=1e-5, rtol=1e-5)

    print("KERNEL_OK")
</pallas_src>

<mosaic_0001>
module attributes {stable_mosaic.version = 11 : i64} {
  func.func @_linear_bias_kernel_f32(%arg0: i32, %arg1: i32, %arg2: i32, %arg3: memref<8x128xf32, #tpu.memory_space<vmem>>, %arg4: memref<128x128xf32, #tpu.memory_space<vmem>>, %arg5: memref<1x128xf32, #tpu.memory_space<vmem>>, %arg6: memref<8x128xf32, #tpu.memory_space<vmem>>) attributes {dimension_semantics = [#tpu.dimension_semantics<parallel>, #tpu.dimension_semantics<parallel>, #tpu.dimension_semantics<arbitrary>], iteration_bounds = array<i64: 1, 1, 1>, scalar_prefetch = 0 : i64, scratch_operands = 0 : i64, tpu.core_type = #tpu.core_type<tc>, window_params = [{transform_indices = @transform_0, window_bounds = array<i64: 8, 128>}, {transform_indices = @transform_1, window_bounds = array<i64: 128, 128>}, {transform_indices = @transform_2, window_bounds = array<i64: 1, 128>}, {transform_indices = @transform_3, window_bounds = array<i64: 8, 128>}]} {
    %c0_i32 = arith.constant 0 : i32
    %0 = arith.cmpi eq, %arg2, %c0_i32 : i32
    %1 = arith.extui %0 : i1 to i32
    %c0_i32_0 = arith.constant 0 : i32
    %2 = arith.cmpi ne, %1, %c0_i32_0 : i32
    scf.if %2 {
      %c0_8 = arith.constant 0 : index
      %c0_9 = arith.constant 0 : index
      %9 = vector.load %arg5[%c0_8, %c0_9] : memref<1x128xf32, #tpu.memory_space<vmem>>, vector<1x128xf32>
      %10 = vector.shape_cast %9 : vector<1x128xf32> to vector<1x128xf32>
      %11 = vector.broadcast %10 : vector<1x128xf32> to vector<8x128xf32>
      %c0_10 = arith.constant 0 : index
      %c0_11 = arith.constant 0 : index
      %12 = vector.load %arg6[%c0_10, %c0_11] : memref<8x128xf32, #tpu.memory_space<vmem>>, vector<8x128xf32>
      tpu.vector_store %arg6[%c0_10, %c0_11], %11 {strides = array<i32>} : memref<8x128xf32, #tpu.memory_space<vmem>>, vector<8x128xf32>,
    } else {
    }
    %c0 = arith.constant 0 : index
    %c0_1 = arith.constant 0 : index
    %3 = vector.load %arg6[%c0, %c0_1] : memref<8x128xf32, #tpu.memory_space<vmem>>, vector<8x128xf32>
    %c0_2 = arith.constant 0 : index
    %c0_3 = arith.constant 0 : index
    %4 = vector.load %arg3[%c0_2, %c0_3] : memref<8x128xf32, #tpu.memory_space<vmem>>, vector<8x128xf32>
    %c0_4 = arith.constant 0 : index
    %c0_5 = arith.constant 0 : index
    %5 = vector.load %arg4[%c0_4, %c0_5] : memref<128x128xf32, #tpu.memory_space<vmem>>, vector<128x128xf32>
    %cst = arith.constant dense<0.000000e+00> : vector<8x128xf32>
    %6 = tpu.matmul %4, %5, %cst {dimension_numbers = #tpu.dot_dimension_numbers<[1], [0], [0], [1], [0, 0, 1, 1], [], []>} : vector<8x128xf32>, vector<128x128xf32>, vector<8x128xf32> -> vector<8x128xf32>
    %7 = arith.addf %3, %6 : vector<8x128xf32>
    %c0_6 = arith.constant 0 : index
    %c0_7 = arith.constant 0 : index
    %8 = vector.load %arg6[%c0_6, %c0_7] : memref<8x128xf32, #tpu.memory_space<vmem>>, vector<8x128xf32>
    tpu.vector_store %arg6[%c0_6, %c0_7], %7 {strides = array<i32>} : memref<8x128xf32, #tpu.memory_space<vmem>>, vector<8x128xf32>,
    return
  }
  func.func @transform_0(%arg0: i32, %arg1: i32, %arg2: i32) -> (i32, i32) {
    %c0_i32 = arith.constant 0 : i32
    return %arg0, %arg2 : i32, i32
  }
  func.func @transform_1(%arg0: i32, %arg1: i32, %arg2: i32) -> (i32, i32) {
    %c0_i32 = arith.constant 0 : i32
    return %arg2, %arg1 : i32, i32
  }
  func.func @transform_2(%arg0: i32, %arg1: i32, %arg2: i32) -> (i32, i32) {
    %c0_i32 = arith.constant 0 : i32
    %c0_i32_0 = arith.constant 0 : i32
    return %c0_i32, %arg1 : i32, i32
  }
  func.func @transform_3(%arg0: i32, %arg1: i32, %arg2: i32) -> (i32, i32) {
    %c0_i32 = arith.constant 0 : i32
    return %arg0, %arg1 : i32, i32
  }
}

</mosaic_0001>

<llo_original>
// kernel: tpu_custom_call.1
$region0: #{tpu_custom_call.1}
  #allocation0 [shape = 'u32[]', space=smem, size = 0x4, offset = 0x4, fixed_abs, tag = 'smem constant byte address 0x4 - core index']
  #allocation1 [shape = 'u32[72,128]{1,0:T(1,128)}', space=vmem, size = 0x9000, scoped, tag = 'internal scratch']
  %s0 = inlined_call_operand.hbm [shape: f32[8,128], index: 0, kind: input, shape index: {}]
  %s1 = inlined_call_operand.hbm [shape: f32[128,128], index: 1, kind: input, shape index: {}]
  %s2 = inlined_call_operand.vmem [shape: f32[1,128], index: 2, kind: input, shape index: {}]
  %s3 = inlined_call_operand.hbm [shape: f32[8,128], index: 3, kind: output, shape index: {}]
  %s4 = sld [smem:[#allocation0]]
  $region34: #{tpu_custom_call.1} parent=0
    _
  %s6 = ssub.s32 1, %s4
  %s7 = scalar_select 0, %s6, %s4
  $region1: #{tpu_custom_call.1} parent=0
    #allocation2 [shape = 'u8[4096]{0}', space=vmem, size = 0x1000, scoped, tag = 'input window, operand 0, single buffered']
    #allocation3 [shape = 's32[1]{0}', space=sflag, size = 0x4, scoped, tag = 'scoped memory for tpu_custom_call.1']
    #allocation4 [shape = 's32[1]{0}', space=sflag, size = 0x4, scoped, tag = 'scoped memory for tpu_custom_call.1']
    #allocation5 [shape = 'u8[65536]{0}', space=vmem, size = 0x10000, scoped, tag = 'input window, operand 1, single buffered']
    #allocation6 [shape = 's32[1]{0}', space=sflag, size = 0x4, scoped, tag = 'scoped memory for tpu_custom_call.1']
    #allocation7 [shape = 'u8[4096]{0}', space=vmem, size = 0x1000, scoped, tag = 'output window, operand 0, single buffered']
    %8 = vsyncpa [#allocation3], 0
    %9 = vsyncpa [#allocation6], 0
    %10 = vsyncpa [#allocation4], 0
    // Predicated region
    $region2: #{tpu_custom_call.1} parent=1 // pred_check
      _
    $region3: #{tpu_custom_call.1} parent=1 // pred_check_branch
      %12 = sbr.rel (0) target = $region5
    $region4: #{tpu_custom_call.1} parent=1 // pred_region
      %14 = vsyncadd [#allocation3], 0
      %s16 = sshll.u32 %s0, 4
      %s17 = int_to_ptr.hbm [resolvable:$true] %s16
      %s18 = sshll.u32 [#allocation2], 4
      %s19 = int_to_ptr.vmem [resolvable:$true] %s18
      %21 = dma.hbm_to_vmem [thread:$0]  %s17, 128, %s19, [#allocation3]
    $region5: #{tpu_custom_call.1} parent=1 // pred_fallthru
      _
    // Predicated region
    $region6: #{tpu_custom_call.1} parent=1 // pred_check
      _
    $region7: #{tpu_custom_call.1} parent=1 // pred_check_branch
      %23 = sbr.rel (0) target = $region9
    $region8: #{tpu_custom_call.1} parent=1 // pred_region
      %25 = vsyncadd [#allocation6], 0
      %s26 = sshll.u32 %s1, 4
      %s27 = int_to_ptr.hbm [resolvable:$true] %s26
      %s28 = sshll.u32 [#allocation5], 4
      %s29 = int_to_ptr.vmem [resolvable:$true] %s28
      %34 = dma.hbm_to_vmem [thread:$0]  %s27, 2048, %s29, [#allocation6], 128, 128, 8
    $region9: #{tpu_custom_call.1} parent=1 // pred_fallthru
      _
    // Predicated region
    $region10: #{tpu_custom_call.1} parent=1 // pred_check
      _
    $region11: #{tpu_custom_call.1} parent=1 // pred_check_branch
      %36 = sbr.rel (0) target = $region13
    $region12: #{tpu_custom_call.1} parent=1 // pred_region
      _
    $region13: #{tpu_custom_call.1} parent=1 // pred_fallthru
      _
    // Predicated region
    $region14: #{tpu_custom_call.1} parent=1 // pred_check
      _
    $region15: #{tpu_custom_call.1} parent=1 // pred_check_branch
      %38 = sbr.rel (0) target = $region17
    $region16: #{tpu_custom_call.1} parent=1 // pred_region
      %40 = dma.done [#allocation3], 128
    $region17: #{tpu_custom_call.1} parent=1 // pred_fallthru
      _
    // Predicated region
    $region18: #{tpu_custom_call.1} parent=1 // pred_check
      _
    $region19: #{tpu_custom_call.1} parent=1 // pred_check_branch
      %42 = sbr.rel (0) target = $region21
    $region20: #{tpu_custom_call.1} parent=1 // pred_region
      %44 = dma.done [#allocation6], 2048
    $region21: #{tpu_custom_call.1} parent=1 // pred_fallthru
      _
    %p45 = scmp.eq.s32.totalorder 0, 0
    // Predicated region
    $region22: #{tpu_custom_call.1} parent=1 // pred_check
      %p46 = pneg %p45
    $region23: #{tpu_custom_call.1} parent=1 // pred_check_branch
      %48 = sbr.rel (%p46) target = $region25
    $region24: #{tpu_custom_call.1} parent=1 // pred_region
      %v49 = vld [vmem:[%s2] sm:$0x1]
      %v51 = vperm.slane %v49, 0
      %53 = vst [vmem:[#allocation7] sm:$0xff] %v51
    $region25: #{tpu_custom_call.1} parent=1 // pred_fallthru
      _
    %v54 = vld [vmem:[#allocation7] sm:$0xff]
    %v55 = vld [vmem:[#allocation2] sm:$0xff]
    %v56 = vld [vmem:[#allocation5] sm:$0xff]
    %v57 = vld [vmem:[#allocation5 + $0x8] sm:$0xff]
    %v58 = vld [vmem:[#allocation5 + $0x10] sm:$0xff]
    %v59 = vld [vmem:[#allocation5 + $0x18] sm:$0xff]
    %v60 = vld [vmem:[#allocation5 + $0x20] sm:$0xff]
    %v61 = vld [vmem:[#allocation5 + $0x28] sm:$0xff]
    %v62 = vld [vmem:[#allocation5 + $0x30] sm:$0xff]
    %v63 = vld [vmem:[#allocation5 + $0x38] sm:$0xff]
    %v64 = vld [vmem:[#allocation5 + $0x40] sm:$0xff]
    %v65 = vld [vmem:[#allocation5 + $0x48] sm:$0xff]
    %v66 = vld [vmem:[#allocation5 + $0x50] sm:$0xff]
    %v67 = vld [vmem:[#allocation5 + $0x58] sm:$0xff]
    %v68 = vld [vmem:[#allocation5 + $0x60] sm:$0xff]
    %v69 = vld [vmem:[#allocation5 + $0x68] sm:$0xff]
    %v70 = vld [vmem:[#allocation5 + $0x70] sm:$0xff]
    %v71 = vld [vmem:[#allocation5 + $0x78] sm:$0xff]
    %72 = vmatpush.msra.mxu0 %v71
    %73 = vmatpush.msra.mxu0 %v70
    %74 = vmatpush.msra.mxu0 %v69
    %75 = vmatpush.msra.mxu0 %v68
    %76 = vmatpush.msra.mxu0 %v67
    %77 = vmatpush.msra.mxu0 %v66
    %78 = vmatpush.msra.mxu0 %v65
    %79 = vmatpush.msra.mxu0 %v64
    %80 = vmatpush.msra.mxu0 %v63
    %81 = vmatpush.msra.mxu0 %v62
    %82 = vmatpush.msra.mxu0 %v61
    %83 = vmatpush.msra.mxu0 %v60
    %84 = vmatpush.msra.mxu0 %v59
    %85 = vmatpush.msra.mxu0 %v58
    %86 = vmatpush.msra.mxu0 %v57
    %87 = vmatpush.msra.mxu0 %v56
    %88 = vmatmul.f32.gmra.mxu0 %v55
    %v89 = vpop.f32.mrf.mxu0
    %v90 = vadd.f32 0.0, %v89
    %91 = vdwg.mxu0
    %v92 = vadd.f32 %v54, %v90
    %93 = vst [vmem:[#allocation7] sm:$0xff] %v92
    // Predicated region
    $region26: #{tpu_custom_call.1} parent=1 // pred_check
      _
    $region27: #{tpu_custom_call.1} parent=1 // pred_check_branch
      %95 = sbr.rel (0) target = $region29
    $region28: #{tpu_custom_call.1} parent=1 // pred_region
      %97 = vsyncadd [#allocation4], 0
      %s99 = sshll.u32 [#allocation7], 4
      %s100 = int_to_ptr.vmem [resolvable:$true] %s99
      %s101 = sshll.u32 %s3, 4
      %s102 = int_to_ptr.hbm [resolvable:$true] %s101
      %104 = dma.vmem_to_hbm [thread:$0]  %s100, 128, %s102, [#allocation4]
    $region29: #{tpu_custom_call.1} parent=1 // pred_fallthru
      _
    // Predicated region
    $region30: #{tpu_custom_call.1} parent=1 // pred_check
      _
    $region31: #{tpu_custom_call.1} parent=1 // pred_check_branch
      %106 = sbr.rel (0) target = $region33
    $region32: #{tpu_custom_call.1} parent=1 // pred_region
      %108 = dma.done [#allocation4], 128
    $region33: #{tpu_custom_call.1} parent=1 // pred_fallthru
      _
    %109 = vsyncpa [#allocation3], 1
    %110 = vsyncpa [#allocation6], 1
    %111 = vsyncpa [#allocation4], 1

</llo_original>
